<compile_context>
chip_gen: v6e
topology: v6e:2x2x1
jax: 0.10.0
libtpu: 0.0.40
codegen_flags: <defaults>
</compile_context>

<pallas_src>
import functools

import jax
import jax.numpy as jnp
from jax.experimental import pallas as pl
from jax.experimental.pallas import tpu as pltpu

LANES = 128


def _round_up(n, m):
    return ((n + m - 1) // m) * m


def _pad2(a, rows, cols):
    """Zero-pad a (possibly smaller) 2-D array into a (rows, cols) array."""
    out = jnp.zeros((rows, cols), a.dtype)
    return out.at[: a.shape[0], : a.shape[1]].set(a)


def _activation(h, kind):
    # h is f32; keep all elementwise math in f32 (v5e VPU/EUP have no bf16 path).
    if kind == "relu":
        return jnp.maximum(h, 0.0)
    elif kind == "tanh":
        return jnp.tanh(h)
    elif kind == "sigmoid":
        return 1.0 / (1.0 + jnp.exp(-h))
    elif kind == "silu":
        return h * (1.0 / (1.0 + jnp.exp(-h)))
    elif kind == "gelu":
        return jax.nn.gelu(h)
    elif kind == "leaky_relu":
        return jnp.where(h >= 0.0, h, 0.01 * h)
    else:
        raise ValueError(f"Unsupported activation function: {kind}")


def mlp_kernel(x_ref, w1_ref, b1_ref, w2_ref, b2_ref, w3_ref, b3_ref, o_ref,
               *, activation):
    # layer1 + folded batch_norm (dropout = identity in eval): bf16 MXU, f32 acc
    h = jnp.dot(x_ref[...], w1_ref[...], preferred_element_type=jnp.float32)
    h = _activation(h + b1_ref[...], activation)

    # layer2 + folded batch_norm2 (dropout2 = identity in eval)
    h = jnp.dot(h.astype(w2_ref.dtype), w2_ref[...],
                preferred_element_type=jnp.float32)
    h = _activation(h + b2_ref[...], activation)

    # layer3 (out width 1): VPU multiply + lane reduction instead of an N=1
    # MXU matmul; final sigmoid uses the EUP (exp + approx reciprocal).
    logit = jnp.sum(h * w3_ref[...], axis=-1, keepdims=True) + b3_ref[...]
    o_ref[...] = pl.reciprocal(1.0 + jnp.exp(-logit), approx=True)


def fold_bn_into_linear(w_t, b, gamma, beta, running_mean, running_var, eps=1e-5):
    """Fold BatchNorm1d (eval mode) into the preceding Linear.
    w_t: [in, out], b: [out] -> folded (w_t', b') with the same shapes."""
    scale = gamma / jnp.sqrt(running_var + eps)          # [out]
    w_folded = w_t * scale[None, :]
    b_folded = (b - running_mean) * scale + beta
    return w_folded, b_folded


def mlp_forward(x, params, activation="relu", block_rows=512):
    """x: [B, input_dim] f32. params from make_params (already padded/bf16)."""
    (w1, b1), (w2, b2), (w3, b3) = params
    B = x.shape[0]
    d_in = w1.shape[0]           # lane-padded input width

    # Batch tile: multiple of 16 (bf16 sublane packing); default 512 rows keeps
    # the double-buffered x tile (2 * 512 * d_in * 2B) tiny even under v7x's
    # 64 MiB VMEM while amortizing the per-step pipeline overhead.
    tm = min(block_rows, _round_up(B, 16))
    tm = _round_up(tm, 16)
    b_pad = _round_up(B, tm)

    # Pad batch + features; padded columns hit zero weight rows => exact math.
    xp = jnp.zeros((b_pad, d_in), jnp.bfloat16)
    xp = xp.at[:B, : x.shape[1]].set(x.astype(jnp.bfloat16))

    grid = (pl.cdiv(b_pad, tm),)

    resident = lambda a: pl.BlockSpec(a.shape, lambda i: (0,) * a.ndim)

    flops = 2 * b_pad * (d_in * w1.shape[1] + w2.shape[0] * w2.shape[1] + w3.shape[1])
    bytes_accessed = (
        int(xp.size) * 2 + b_pad * 4
        + sum(int(p.size) * p.dtype.itemsize for pair in params for p in pair))
    cost = pl.CostEstimate(flops=int(flops),
                           transcendentals=int(b_pad * (w1.shape[1] + w2.shape[1] + 1)),
                           bytes_accessed=int(bytes_accessed))

    out = pl.pallas_call(
        functools.partial(mlp_kernel, activation=activation),
        out_shape=jax.ShapeDtypeStruct((b_pad, 1), jnp.float32),
        grid=grid,
        in_specs=[
            pl.BlockSpec((tm, d_in), lambda i: (i, 0)),   # x: tiled over batch
            resident(w1), resident(b1),                   # weights/biases stay
            resident(w2), resident(b2),                   # VMEM-resident across
            resident(w3), resident(b3),                   # the whole grid
        ],
        out_specs=pl.BlockSpec((tm, 1), lambda i: (i, 0)),
        compiler_params=pltpu.CompilerParams(
            dimension_semantics=("parallel",),            # megacore on v7x
            vmem_limit_bytes=32 * 1024 * 1024,            # safe under v7x 64 MiB
        ),
        cost_estimate=cost,
    )(xp, w1, b1, w2, b2, w3, b3)
    return out[:B]


def make_params(key, input_dim, hidden_layer, compute_dtype=jnp.bfloat16):
    """Deterministic synthetic parameters matching MLP_model's __init__ shapes.
    BatchNorm running stats/affine are folded into the preceding Linear; every
    feature dim is zero-padded to a 128-lane multiple; matmul weights in bf16,
    biases / final row in f32."""
    ks = jax.random.split(key, 12)

    def lin(kw, kb, fan_in, fan_out):
        bound = 1.0 / jnp.sqrt(fan_in)
        w = jax.random.uniform(kw, (fan_in, fan_out), jnp.float32, -bound, bound)
        b = jax.random.uniform(kb, (fan_out,), jnp.float32, -bound, bound)
        return w, b

    def bn(kg, kb, km, kv, n):
        gamma = 1.0 + 0.1 * jax.random.normal(kg, (n,), jnp.float32)
        beta = 0.1 * jax.random.normal(kb, (n,), jnp.float32)
        rmean = 0.1 * jax.random.normal(km, (n,), jnp.float32)
        rvar = 1.0 + 0.1 * jax.random.uniform(kv, (n,), jnp.float32)
        return gamma, beta, rmean, rvar

    d_in = _round_up(input_dim, LANES)
    d_h1 = _round_up(56, LANES)
    d_h2 = _round_up(hidden_layer, LANES)

    # layer1: Linear(input_dim, 56) + BatchNorm1d(56)
    w1, b1 = lin(ks[0], ks[1], input_dim, 56)
    w1, b1 = fold_bn_into_linear(w1, b1, *bn(ks[2], ks[3], ks[4], ks[5], 56))

    # layer2: Linear(56, hidden_layer) + BatchNorm1d(hidden_layer)
    w2, b2 = lin(ks[6], ks[7], 56, hidden_layer)
    w2, b2 = fold_bn_into_linear(w2, b2, *bn(ks[8], ks[9], ks[10], ks[11], hidden_layer))

    # layer3: Linear(hidden_layer, 1)
    kw3, kb3 = jax.random.split(jax.random.fold_in(key, 99))
    w3, b3 = lin(kw3, kb3, hidden_layer, 1)

    w1p = _pad2(w1, d_in, d_h1).astype(compute_dtype)
    b1p = _pad2(b1[None, :], 1, d_h1)                 # f32 [1, d_h1]
    w2p = _pad2(w2, d_h1, d_h2).astype(compute_dtype)
    b2p = _pad2(b2[None, :], 1, d_h2)                 # f32 [1, d_h2]
    w3p = _pad2(w3.T, 1, d_h2)                        # f32 row [1, d_h2]
    b3p = b3.reshape(1, 1)                            # f32 [1, 1]
    return ((w1p, b1p), (w2p, b2p), (w3p, b3p))


def mlp_reference(x, params, activation="relu"):
    """Pure-JAX reference mirroring the kernel math (bf16 matmuls, f32 acc)."""
    (w1, b1), (w2, b2), (w3, b3) = params
    d_in = w1.shape[0]
    xp = jnp.zeros((x.shape[0], d_in), jnp.bfloat16)
    xp = xp.at[:, : x.shape[1]].set(x.astype(jnp.bfloat16))
    h = jnp.dot(xp, w1, preferred_element_type=jnp.float32) + b1
    h = _activation(h, activation)                    # dropout = identity (eval)
    h = jnp.dot(h.astype(w2.dtype), w2, preferred_element_type=jnp.float32) + b2
    h = _activation(h, activation)                    # dropout2 = identity (eval)
    logit = jnp.sum(h * w3, axis=-1, keepdims=True) + b3
    return 1.0 / (1.0 + jnp.exp(-logit))


if __name__ == "__main__":
    # TODO(synk): training-mode Dropout / batch-statistics BatchNorm are not
    # modeled; this kernel implements the eval-mode forward pass.
    batch, input_dim, hidden_layer = 256, 16, 32
    key = jax.random.PRNGKey(0)
    kx, kp = jax.random.split(key)

    x = jax.random.normal(kx, (batch, input_dim), jnp.float32)
    params = make_params(kp, input_dim, hidden_layer)

    # small demo: 128-row tiles -> 2 pipelined grid steps
    out = mlp_forward(x, params, activation="relu", block_rows=128)
    jax.block_until_ready(out)

    ref = mlp_reference(x, params, activation="relu")
    assert out.shape == (batch, 1)
    # approx-reciprocal sigmoid in the kernel vs exact divide in the reference
    assert jnp.allclose(out, ref, atol=2e-3), float(jnp.max(jnp.abs(out - ref)))

    print("KERNEL_OK")
</pallas_src>

<mosaic_0001>
module attributes {stable_mosaic.version = 11 : i64} {
  func.func @mlp_kernel(%arg0: i32, %arg1: memref<128x128xbf16, #tpu.memory_space<vmem>>, %arg2: memref<128x128xbf16, #tpu.memory_space<vmem>>, %arg3: memref<1x128xf32, #tpu.memory_space<vmem>>, %arg4: memref<128x128xbf16, #tpu.memory_space<vmem>>, %arg5: memref<1x128xf32, #tpu.memory_space<vmem>>, %arg6: memref<1x128xf32, #tpu.memory_space<vmem>>, %arg7: memref<1x1xf32, #tpu.memory_space<vmem>>, %arg8: memref<128x1xf32, #tpu.memory_space<vmem>>) attributes {dimension_semantics = [#tpu.dimension_semantics<parallel>], iteration_bounds = array<i64: 2>, scalar_prefetch = 0 : i64, scratch_operands = 0 : i64, tpu.core_type = #tpu.core_type<tc>, window_params = [{transform_indices = @transform_0, window_bounds = array<i64: 128, 128>}, {pipeline_mode = #tpu.pipeline_mode<synchronous>, transform_indices = @transform_1, window_bounds = array<i64: 128, 128>}, {pipeline_mode = #tpu.pipeline_mode<synchronous>, transform_indices = @transform_2, window_bounds = array<i64: 1, 128>}, {pipeline_mode = #tpu.pipeline_mode<synchronous>, transform_indices = @transform_3, window_bounds = array<i64: 128, 128>}, {pipeline_mode = #tpu.pipeline_mode<synchronous>, transform_indices = @transform_4, window_bounds = array<i64: 1, 128>}, {pipeline_mode = #tpu.pipeline_mode<synchronous>, transform_indices = @transform_5, window_bounds = array<i64: 1, 128>}, {pipeline_mode = #tpu.pipeline_mode<synchronous>, transform_indices = @transform_6, window_bounds = array<i64: 1, 1>}, {transform_indices = @transform_7, window_bounds = array<i64: 128, 1>}]} {
    %c0 = arith.constant 0 : index
    %c0_0 = arith.constant 0 : index
    %0 = vector.load %arg1[%c0, %c0_0] : memref<128x128xbf16, #tpu.memory_space<vmem>>, vector<128x128xbf16>
    %c0_1 = arith.constant 0 : index
    %c0_2 = arith.constant 0 : index
    %1 = vector.load %arg2[%c0_1, %c0_2] : memref<128x128xbf16, #tpu.memory_space<vmem>>, vector<128x128xbf16>
    %cst = arith.constant dense<0.000000e+00> : vector<128x128xf32>
    %2 = tpu.matmul %0, %1, %cst {dimension_numbers = #tpu.dot_dimension_numbers<[1], [0], [0], [1], [0, 0, 1, 1], [], []>} : vector<128x128xbf16>, vector<128x128xbf16>, vector<128x128xf32> -> vector<128x128xf32>
    %c0_3 = arith.constant 0 : index
    %c0_4 = arith.constant 0 : index
    %3 = vector.load %arg3[%c0_3, %c0_4] : memref<1x128xf32, #tpu.memory_space<vmem>>, vector<1x128xf32>
    %4 = vector.broadcast %3 : vector<1x128xf32> to vector<128x128xf32>
    %5 = arith.addf %2, %4 : vector<128x128xf32>
    %cst_5 = arith.constant 0.000000e+00 : f32
    %6 = vector.broadcast %cst_5 : f32 to vector<128x128xf32>
    %7 = arith.maximumf %5, %6 : vector<128x128xf32>
    %8 = arith.truncf %7 : vector<128x128xf32> to vector<128x128xbf16>
    %c0_6 = arith.constant 0 : index
    %c0_7 = arith.constant 0 : index
    %9 = vector.load %arg4[%c0_6, %c0_7] : memref<128x128xbf16, #tpu.memory_space<vmem>>, vector<128x128xbf16>
    %cst_8 = arith.constant dense<0.000000e+00> : vector<128x128xf32>
    %10 = tpu.matmul %8, %9, %cst_8 {dimension_numbers = #tpu.dot_dimension_numbers<[1], [0], [0], [1], [0, 0, 1, 1], [], []>} : vector<128x128xbf16>, vector<128x128xbf16>, vector<128x128xf32> -> vector<128x128xf32>
    %c0_9 = arith.constant 0 : index
    %c0_10 = arith.constant 0 : index
    %11 = vector.load %arg5[%c0_9, %c0_10] : memref<1x128xf32, #tpu.memory_space<vmem>>, vector<1x128xf32>
    %12 = vector.broadcast %11 : vector<1x128xf32> to vector<128x128xf32>
    %13 = arith.addf %10, %12 : vector<128x128xf32>
    %cst_11 = arith.constant 0.000000e+00 : f32
    %14 = vector.broadcast %cst_11 : f32 to vector<128x128xf32>
    %15 = arith.maximumf %13, %14 : vector<128x128xf32>
    %c0_12 = arith.constant 0 : index
    %c0_13 = arith.constant 0 : index
    %16 = vector.load %arg6[%c0_12, %c0_13] : memref<1x128xf32, #tpu.memory_space<vmem>>, vector<1x128xf32>
    %17 = vector.broadcast %16 : vector<1x128xf32> to vector<128x128xf32>
    %18 = arith.mulf %15, %17 : vector<128x128xf32>
    %cst_14 = arith.constant dense<0.000000e+00> : vector<128xf32>
    %19 = vector.multi_reduction <add>, %18, %cst_14 [1] : vector<128x128xf32> to vector<128xf32>
    %20 = vector.shape_cast %19 : vector<128xf32> to vector<128x1xf32>
    %c0_15 = arith.constant 0 : index
    %c0_16 = arith.constant 0 : index
    %21 = vector.load %arg7[%c0_15, %c0_16] : memref<1x1xf32, #tpu.memory_space<vmem>>, vector<1x1xf32>
    %22 = vector.broadcast %21 : vector<1x1xf32> to vector<128x1xf32>
    %23 = arith.addf %20, %22 : vector<128x1xf32>
    %cst_17 = arith.constant 0.000000e+00 : f32
    %24 = vector.broadcast %cst_17 : f32 to vector<128x1xf32>
    %25 = arith.subf %24, %23 : vector<128x1xf32>
    %26 = math.exp %25 : vector<128x1xf32>
    %cst_18 = arith.constant 1.000000e+00 : f32
    %27 = vector.broadcast %cst_18 : f32 to vector<128x1xf32>
    %28 = arith.addf %27, %26 : vector<128x1xf32>
    %29 = tpu.reciprocal %28 {approx = true} : vector<128x1xf32> -> vector<128x1xf32>
    %c0_19 = arith.constant 0 : index
    %c0_20 = arith.constant 0 : index
    %30 = vector.load %arg8[%c0_19, %c0_20] : memref<128x1xf32, #tpu.memory_space<vmem>>, vector<128x1xf32>
    tpu.vector_store %arg8[%c0_19, %c0_20], %29 {strides = array<i32>} : memref<128x1xf32, #tpu.memory_space<vmem>>, vector<128x1xf32>,
    return
  }
  func.func @transform_0(%arg0: i32) -> (i32, i32) {
    %c0_i32 = arith.constant 0 : i32
    %c0_i32_0 = arith.constant 0 : i32
    return %arg0, %c0_i32 : i32, i32
  }
  func.func @transform_1(%arg0: i32) -> (i32, i32) {
    %c0_i32 = arith.constant 0 : i32
    %c0_i32_0 = arith.constant 0 : i32
    %c0_i32_1 = arith.constant 0 : i32
    return %c0_i32, %c0_i32_0 : i32, i32
  }
  func.func @transform_2(%arg0: i32) -> (i32, i32) {
    %c0_i32 = arith.constant 0 : i32
    %c0_i32_0 = arith.constant 0 : i32
    %c0_i32_1 = arith.constant 0 : i32
    return %c0_i32, %c0_i32_0 : i32, i32
  }
  func.func @transform_3(%arg0: i32) -> (i32, i32) {
    %c0_i32 = arith.constant 0 : i32
    %c0_i32_0 = arith.constant 0 : i32
    %c0_i32_1 = arith.constant 0 : i32
    return %c0_i32, %c0_i32_0 : i32, i32
  }
  func.func @transform_4(%arg0: i32) -> (i32, i32) {
    %c0_i32 = arith.constant 0 : i32
    %c0_i32_0 = arith.constant 0 : i32
    %c0_i32_1 = arith.constant 0 : i32
    return %c0_i32, %c0_i32_0 : i32, i32
  }
  func.func @transform_5(%arg0: i32) -> (i32, i32) {
    %c0_i32 = arith.constant 0 : i32
    %c0_i32_0 = arith.constant 0 : i32
    %c0_i32_1 = arith.constant 0 : i32
    return %c0_i32, %c0_i32_0 : i32, i32
  }
  func.func @transform_6(%arg0: i32) -> (i32, i32) {
    %c0_i32 = arith.constant 0 : i32
    %c0_i32_0 = arith.constant 0 : i32
    %c0_i32_1 = arith.constant 0 : i32
    return %c0_i32, %c0_i32_0 : i32, i32
  }
  func.func @transform_7(%arg0: i32) -> (i32, i32) {
    %c0_i32 = arith.constant 0 : i32
    %c0_i32_0 = arith.constant 0 : i32
    return %arg0, %c0_i32 : i32, i32
  }
}

</mosaic_0001>

<llo_original>
// kernel: tpu_custom_call.1
$region0: #{tpu_custom_call.1}
  #allocation0 [shape = 'u32[]', space=smem, size = 0x4, offset = 0x4, fixed_abs, tag = 'smem constant byte address 0x4 - core index']
  #allocation1 [shape = 'u32[144,128]{1,0:T(1,128)}', space=vmem, size = 0x12000, scoped, tag = 'internal scratch']
  #allocation2 [shape = 'f32[1,1]{1,0:T(1,128)S(1)}', space=vmem, size = 0x200, scoped, tag = 'scoped memory for tpu_custom_call.1']
  %s0 = inlined_call_operand.hbm [shape: bf16[256,128], index: 0, kind: input, shape index: {}]
  %s1 = inlined_call_operand.hbm [shape: bf16[128,128], index: 1, kind: input, shape index: {}]
  %s2 = inlined_call_operand.vmem [shape: f32[1,128], index: 2, kind: input, shape index: {}]
  %s3 = inlined_call_operand.hbm [shape: bf16[128,128], index: 3, kind: input, shape index: {}]
  %s4 = inlined_call_operand.vmem [shape: f32[1,128], index: 4, kind: input, shape index: {}]
  %s5 = inlined_call_operand.vmem [shape: f32[1,128], index: 5, kind: input, shape index: {}]
  %s6 = inlined_call_operand.<no memory space> [shape: f32[1,1], index: 6, kind: input, shape index: {}]
  %s7 = inlined_call_operand.vmem [shape: f32[256,1], index: 7, kind: output, shape index: {}]
  %s8 = sld [smem:[#allocation0]]
  $region73: #{tpu_custom_call.1} parent=0
    _
  %s10 = ssub.s32 1, %s8
  %s11 = scalar_select 0, %s10, %s8
  %v12 = vstv %s6
  %13 = vst [vmem:[#allocation2] sm:$0x1] %v12
  $region1: #{tpu_custom_call.1} parent=0
    #allocation3 [shape = 'u8[65536]{0}', space=vmem, size = 0x10000, scoped, tag = 'input window, operand 0']
    #allocation4 [shape = 's32[2]{0}', space=sflag, size = 0x8, scoped, tag = 'scoped memory for tpu_custom_call.1']
    #allocation5 [shape = 'u8[32768]{0}', space=vmem, size = 0x8000, scoped, tag = 'input window, operand 1, single buffered']
    #allocation6 [shape = 's32[1]{0}', space=sflag, size = 0x4, scoped, tag = 'scoped memory for tpu_custom_call.1']
    #allocation7 [shape = 'u8[32768]{0}', space=vmem, size = 0x8000, scoped, tag = 'input window, operand 3, single buffered']
    %14 = vsyncpa [#allocation4], 0
    %s15 = scalar_lea.sflag [#allocation4], 1
    %16 = vsyncpa %s15, 0
    %17 = vsyncpa [#allocation6], 0
    loop: start=0, step=1, limit=4
    $region2: #{tpu_custom_call.1} parent=1 // loop_pre_header
      _
    $region3: #{tpu_custom_call.1} parent=1 // loop_header
      %s19 = sphi 0, %s23
      %p20 = scmp.ge.s32.totalorder %s19, 4
      %s29 = sphi 0, %s31
      %s32 = sphi 0, %s29
      %s33 = sphi 0, %s32
      %s49 = sphi 0, %s33
      %s53 = sphi 0, %s53
      %s55 = sphi 0, %s53
      %s56 = sphi 0, %s55
      %s70 = sphi 0, %s56
      %s74 = sphi 0, %s74
      %s76 = sphi 0, %s74
      %s77 = sphi 0, %s76
      %s91 = sphi 0, %s77
      %s95 = sphi 0, %s95
      %s97 = sphi 0, %s95
      %s98 = sphi 0, %s97
      %s112 = sphi 0, %s98
      %s116 = sphi 0, %s116
      %s118 = sphi 0, %s116
      %s119 = sphi 0, %s118
      %s133 = sphi 0, %s119
      %s137 = sphi 0, %s137
      %s139 = sphi 0, %s137
      %s140 = sphi 0, %s139
      %s154 = sphi 0, %s140
      %s158 = sphi 0, %s158
      %s160 = sphi 0, %s158
      %s161 = sphi 0, %s160
      %s175 = sphi 0, %s161
      %s181 = sphi 0, %s183
      %s184 = sphi 0, %s181
      %s185 = sphi 0, %s184
      %s201 = sphi 0, %s185
    $region4: #{tpu_custom_call.1} parent=1 // loop_header_branch
      %22 = sbr.rel (%p20) target = $region8
    $region5: #{tpu_custom_call.1} parent=1 // loop_body
      %s24 = ssub.s32 %s19, 1
      %s25 = ssub.s32 %s19, 2
      %s26 = sadd.s32 %s19, 1
      %s27 = ssub.s32 %s19, %s26
      %p28 = scmp.eq.s32.totalorder %s27, 0
      %s30 = sadd.s32 %s29, 1
      %s31 = scalar_select %p28, %s29, %s30
      %p34 = pneg %p28
      %p35 = scmp.eq.s32.totalorder %s19, 1
      %p36 = por %p34, %p35
      %p37 = scmp.ne.s32.totalorder %s29, %s32
      %p38 = scmp.eq.s32.totalorder %s19, 0
      %p39 = por %p37, %p38
      %p40 = scmp.ne.s32.totalorder %s29, %s32
      %p41 = scmp.eq.s32.totalorder %s24, 1
      %p42 = por %p40, %p41
      %p43 = scmp.ne.s32.totalorder %s32, %s33
      %p44 = scmp.eq.s32.totalorder %s24, 0
      %p45 = por %p43, %p44
      %p46 = scmp.ne.s32.totalorder %s32, %s33
      %p47 = scmp.eq.s32.totalorder %s25, 1
      %p48 = por %p46, %p47
      %p50 = scmp.ne.s32.totalorder %s33, %s49
      %p51 = scmp.eq.s32.totalorder %s25, 0
      %p52 = por %p50, %p51
      %s54 = sadd.s32 %s53, 1
      %p57 = scmp.eq.s32.totalorder %s19, 1
      %p58 = scmp.ne.s32.totalorder %s53, %s55
      %p59 = scmp.eq.s32.totalorder %s19, 0
      %p60 = por %p58, %p59
      %p61 = scmp.ne.s32.totalorder %s53, %s55
      %p62 = scmp.eq.s32.totalorder %s24, 1
      %p63 = por %p61, %p62
      %p64 = scmp.ne.s32.totalorder %s55, %s56
      %p65 = scmp.eq.s32.totalorder %s24, 0
      %p66 = por %p64, %p65
      %p67 = scmp.ne.s32.totalorder %s55, %s56
      %p68 = scmp.eq.s32.totalorder %s25, 1
      %p69 = por %p67, %p68
      %p71 = scmp.ne.s32.totalorder %s56, %s70
      %p72 = scmp.eq.s32.totalorder %s25, 0
      %p73 = por %p71, %p72
      %s75 = sadd.s32 %s74, 1
      %p78 = scmp.eq.s32.totalorder %s19, 1
      %p79 = scmp.ne.s32.totalorder %s74, %s76
      %p80 = scmp.eq.s32.totalorder %s19, 0
      %p81 = por %p79, %p80
      %p82 = scmp.ne.s32.totalorder %s74, %s76
      %p83 = scmp.eq.s32.totalorder %s24, 1
      %p84 = por %p82, %p83
      %p85 = scmp.ne.s32.totalorder %s76, %s77
      %p86 = scmp.eq.s32.totalorder %s24, 0
      %p87 = por %p85, %p86
      %p88 = scmp.ne.s32.totalorder %s76, %s77
      %p89 = scmp.eq.s32.totalorder %s25, 1
      %p90 = por %p88, %p89
      %p92 = scmp.ne.s32.totalorder %s77, %s91
      %p93 = scmp.eq.s32.totalorder %s25, 0
      %p94 = por %p92, %p93
      %s96 = sadd.s32 %s95, 1
      %p99 = scmp.eq.s32.totalorder %s19, 1
      %p100 = scmp.ne.s32.totalorder %s95, %s97
      %p101 = scmp.eq.s32.totalorder %s19, 0
      %p102 = por %p100, %p101
      %p103 = scmp.ne.s32.totalorder %s95, %s97
      %p104 = scmp.eq.s32.totalorder %s24, 1
      %p105 = por %p103, %p104
      %p106 = scmp.ne.s32.totalorder %s97, %s98
      %p107 = scmp.eq.s32.totalorder %s24, 0
      %p108 = por %p106, %p107
      %p109 = scmp.ne.s32.totalorder %s97, %s98
      %p110 = scmp.eq.s32.totalorder %s25, 1
      %p111 = por %p109, %p110
      %p113 = scmp.ne.s32.totalorder %s98, %s112
      %p114 = scmp.eq.s32.totalorder %s25, 0
      %p115 = por %p113, %p114
      %s117 = sadd.s32 %s116, 1
      %p120 = scmp.eq.s32.totalorder %s19, 1
      %p121 = scmp.ne.s32.totalorder %s116, %s118
      %p122 = scmp.eq.s32.totalorder %s19, 0
      %p123 = por %p121, %p122
      %p124 = scmp.ne.s32.totalorder %s116, %s118
      %p125 = scmp.eq.s32.totalorder %s24, 1
      %p126 = por %p124, %p125
      %p127 = scmp.ne.s32.totalorder %s118, %s119
      %p128 = scmp.eq.s32.totalorder %s24, 0
      %p129 = por %p127, %p128
      %p130 = scmp.ne.s32.totalorder %s118, %s119
      %p131 = scmp.eq.s32.totalorder %s25, 1
      %p132 = por %p130, %p131
      %p134 = scmp.ne.s32.totalorder %s119, %s133
      %p135 = scmp.eq.s32.totalorder %s25, 0
      %p136 = por %p134, %p135
      %s138 = sadd.s32 %s137, 1
      %p141 = scmp.eq.s32.totalorder %s19, 1
      %p142 = scmp.ne.s32.totalorder %s137, %s139
      %p143 = scmp.eq.s32.totalorder %s19, 0
      %p144 = por %p142, %p143
      %p145 = scmp.ne.s32.totalorder %s137, %s139
      %p146 = scmp.eq.s32.totalorder %s24, 1
      %p147 = por %p145, %p146
      %p148 = scmp.ne.s32.totalorder %s139, %s140
      %p149 = scmp.eq.s32.totalorder %s24, 0
      %p150 = por %p148, %p149
      %p151 = scmp.ne.s32.totalorder %s139, %s140
      %p152 = scmp.eq.s32.totalorder %s25, 1
      %p153 = por %p151, %p152
      %p155 = scmp.ne.s32.totalorder %s140, %s154
      %p156 = scmp.eq.s32.totalorder %s25, 0
      %p157 = por %p155, %p156
      %s159 = sadd.s32 %s158, 1
      %p162 = scmp.eq.s32.totalorder %s19, 1
      %p163 = scmp.ne.s32.totalorder %s158, %s160
      %p164 = scmp.eq.s32.totalorder %s19, 0
      %p165 = por %p163, %p164
      %p166 = scmp.ne.s32.totalorder %s158, %s160
      %p167 = scmp.eq.s32.totalorder %s24, 1
      %p168 = por %p166, %p167
      %p169 = scmp.ne.s32.totalorder %s160, %s161
      %p170 = scmp.eq.s32.totalorder %s24, 0
      %p171 = por %p169, %p170
      %p172 = scmp.ne.s32.totalorder %s160, %s161
      %p173 = scmp.eq.s32.totalorder %s25, 1
      %p174 = por %p172, %p173
      %p176 = scmp.ne.s32.totalorder %s161, %s175
      %p177 = scmp.eq.s32.totalorder %s25, 0
      %p178 = por %p176, %p177
      %s179 = ssub.s32 %s19, %s26
      %p180 = scmp.eq.s32.totalorder %s179, 0
      %s182 = sadd.s32 %s181, 1
      %s183 = scalar_select %p180, %s181, %s182
      %p186 = pneg %p180
      %p187 = scmp.eq.s32.totalorder %s19, 1
      %p188 = por %p186, %p187
      %p189 = scmp.ne.s32.totalorder %s181, %s184
      %p190 = scmp.eq.s32.totalorder %s19, 0
      %p191 = por %p189, %p190
      %p192 = scmp.ne.s32.totalorder %s181, %s184
      %p193 = scmp.eq.s32.totalorder %s24, 1
      %p194 = por %p192, %p193
      %p195 = scmp.ne.s32.totalorder %s184, %s185
      %p196 = scmp.eq.s32.totalorder %s24, 0
      %p197 = por %p195, %p196
      %p198 = scmp.ne.s32.totalorder %s184, %s185
      %p199 = scmp.eq.s32.totalorder %s25, 1
      %p200 = por %p198, %p199
      %p202 = scmp.ne.s32.totalorder %s185, %s201
      %p203 = scmp.eq.s32.totalorder %s25, 0
      %p204 = por %p202, %p203
      %p205 = scmp.le.s32.totalorder 1, %s19
      %p206 = scmp.lt.s32.totalorder %s19, 3
      %p207 = pnand %p205, %p206
      %p208 = pneg %p207
      // Predicated region
      $region9: #{tpu_custom_call.1} parent=5 // pred_check
        _
      $region10: #{tpu_custom_call.1} parent=5 // pred_check_branch
        %210 = sbr.rel (%p207) target = $region12
      $region11: #{tpu_custom_call.1} parent=5 // pred_region
        %s211 = ssub.s32 %s19, 1
        // Predicated region
        $region13: #{tpu_custom_call.1} parent=11 // pred_check
          %p212 = pneg %p66
        $region14: #{tpu_custom_call.1} parent=11 // pred_check_branch
          %214 = sbr.rel (%p212) target = $region16
        $region15: #{tpu_custom_call.1} parent=11 // pred_region
          %s216 = ssub.s32 1024, 1024
          %217 = vsyncadd [#allocation6], %s216
          %s218 = sshll.u32 [#allocation5], 4
          %s219 = int_to_ptr.vmem [resolvable:$true] %s218
          %224 = dma.hbm_to_vmem [thread:$0]  %s1, 1024, %s219, [#allocation6], 64, 64, 4
        $region16: #{tpu_custom_call.1} parent=11 // pred_fallthru
          _
        // Predicated region
        $region17: #{tpu_custom_call.1} parent=11 // pred_check
          %p225 = pneg %p87
        $region18: #{tpu_custom_call.1} parent=11 // pred_check_branch
          %227 = sbr.rel (%p225) target = $region20
        $region19: #{tpu_custom_call.1} parent=11 // pred_region
          _
        $region20: #{tpu_custom_call.1} parent=11 // pred_fallthru
          _
        // Predicated region
        $region21: #{tpu_custom_call.1} parent=11 // pred_check
          %p228 = pneg %p108
        $region22: #{tpu_custom_call.1} parent=11 // pred_check_branch
          %230 = sbr.rel (%p228) target = $region24
        $region23: #{tpu_custom_call.1} parent=11 // pred_region
          %s232 = ssub.s32 1024, 1024
          %233 = vsyncadd [#allocation6], %s232
          %s234 = sshll.u32 [#allocation7], 4
          %s235 = int_to_ptr.vmem [resolvable:$true] %s234
          %240 = dma.hbm_to_vmem [thread:$0]  %s3, 1024, %s235, [#allocation6], 64, 64, 4
        $region24: #{tpu_custom_call.1} parent=11 // pred_fallthru
          _
        // Predicated region
        $region25: #{tpu_custom_call.1} parent=11 // pred_check
          %p241 = pneg %p129
        $region26: #{tpu_custom_call.1} parent=11 // pred_check_branch
          %243 = sbr.rel (%p241) target = $region28
        $region27: #{tpu_custom_call.1} parent=11 // pred_region
          _
        $region28: #{tpu_custom_call.1} parent=11 // pred_fallthru
          _
        // Predicated region
        $region29: #{tpu_custom_call.1} parent=11 // pred_check
          %p244 = pneg %p150
        $region30: #{tpu_custom_call.1} parent=11 // pred_check_branch
          %246 = sbr.rel (%p244) target = $region32
        $region31: #{tpu_custom_call.1} parent=11 // pred_region
          _
        $region32: #{tpu_custom_call.1} parent=11 // pred_fallthru
          _
        // Predicated region
        $region33: #{tpu_custom_call.1} parent=11 // pred_check
          %p247 = pneg %p171
        $region34: #{tpu_custom_call.1} parent=11 // pred_check_branch
          %249 = sbr.rel (%p247) target = $region36
        $region35: #{tpu_custom_call.1} parent=11 // pred_region
          _
        $region36: #{tpu_custom_call.1} parent=11 // pred_fallthru
          _
      $region12: #{tpu_custom_call.1} parent=5 // pred_fallthru
        _
      %p250 = scmp.lt.s32.totalorder %s19, 2
      // Predicated region
      $region37: #{tpu_custom_call.1} parent=5 // pred_check
        %p251 = pneg %p250
      $region38: #{tpu_custom_call.1} parent=5 // pred_check_branch
        %253 = sbr.rel (%p251) target = $region40
      $region39: #{tpu_custom_call.1} parent=5 // pred_region
        // Predicated region
        $region41: #{tpu_custom_call.1} parent=39 // pred_check
          %p254 = pneg %p39
        $region42: #{tpu_custom_call.1} parent=39 // pred_check_branch
          %256 = sbr.rel (%p254) target = $region44
        $region43: #{tpu_custom_call.1} parent=39 // pred_region
          %s257 = sand.u32 %s29, 1
          %s258 = scalar_lea.sflag [#allocation4], %s257
          %s259 = sand.u32 %s29, 1
          %s260 = smul.addr %s259, 64
          %s261 = scalar_lea.vmem [#allocation3], %s260
          %s262 = smul.u32 16, %s19
          %s264 = ssub.s32 1024, 1024
          %265 = vsyncadd %s258, %s264
          %s266 = smul.addr %s262, 64
          %s267 = scalar_lea.hbm %s0, %s266
          %s268 = sshll.u32 %s261, 4
          %s269 = int_to_ptr.vmem [resolvable:$true] %s268
          %274 = dma.hbm_to_vmem [thread:$0]  %s267, 1024, %s269, %s258, 64, 64, 4
        $region44: #{tpu_custom_call.1} parent=39 // pred_fallthru
          _
      $region40: #{tpu_custom_call.1} parent=5 // pred_fallthru
        _
      %p275 = scmp.le.s32.totalorder 1, %s19
      %p276 = scmp.lt.s32.totalorder %s19, 3
      %p277 = pnand %p275, %p276
      %p278 = pneg %p277
      // Predicated region
      $region45: #{tpu_custom_call.1} parent=5 // pred_check
        _
      $region46: #{tpu_custom_call.1} parent=5 // pred_check_branch
        %280 = sbr.rel (%p277) target = $region48
      $region47: #{tpu_custom_call.1} parent=5 // pred_region
        %s281 = ssub.s32 %s19, 1
        %s282 = sand.u32 %s32, 1
        %s283 = scalar_lea.sflag [#allocation4], %s282
        %s284 = sand.u32 %s32, 1
        %s285 = smul.addr %s284, 64
        %s286 = scalar_lea.vmem [#allocation3], %s285
        // Predicated region
        $region49: #{tpu_custom_call.1} parent=47 // pred_check
          %p287 = pneg %p45
        $region50: #{tpu_custom_call.1} parent=47 // pred_check_branch
          %289 = sbr.rel (%p287) target = $region52
        $region51: #{tpu_custom_call.1} parent=47 // pred_region
          %290 = dma.done %s283, 1024
        $region52: #{tpu_custom_call.1} parent=47 // pred_fallthru
          _
        // Predicated region
        $region53: #{tpu_custom_call.1} parent=47 // pred_check
          %p291 = pneg %p66
        $region54: #{tpu_custom_call.1} parent=47 // pred_check_branch
          %293 = sbr.rel (%p291) target = $region56
        $region55: #{tpu_custom_call.1} parent=47 // pred_region
          %294 = dma.done [#allocation6], 1024
        $region56: #{tpu_custom_call.1} parent=47 // pred_fallthru
          _
        // Predicated region
        $region57: #{tpu_custom_call.1} parent=47 // pred_check
          %p295 = pneg %p108
        $region58: #{tpu_custom_call.1} parent=47 // pred_check_branch
          %297 = sbr.rel (%p295) target = $region60
        $region59: #{tpu_custom_call.1} parent=47 // pred_region
          %298 = dma.done [#allocation6], 1024
        $region60: #{tpu_custom_call.1} parent=47 // pred_fallthru
          _
        %s299 = sand.u32 %s32, 1
        %s300 = scalar_lea.sflag [#allocation4], %s299
        %s301 = sand.u32 %s32, 1
        %s302 = smul.addr %s301, 64
        %s303 = scalar_lea.vmem [#allocation3], %s302
        %p304 = pneg %p45
        %p305 = pneg %p42
        %p306 = pneg %p66
        %p307 = pneg %p63
        %p308 = pneg %p87
        %p309 = pneg %p84
        %p310 = pneg %p108
        %p311 = pneg %p105
        %p312 = pneg %p129
        %p313 = pneg %p126
        %p314 = pneg %p150
        %p315 = pneg %p147
        %p316 = pneg %p171
        %p317 = pneg %p168
        %p318 = pneg %p197
        %p319 = pneg %p194
        %s320 = smul.u32 16, %s24
        %p321 = scmp.lt.s32.totalorder %s320, 31
        %s322 = scalar_select %p321, %s320, 31
        %s323 = smul.addr %s322, 8
        %s324 = scalar_lea.vmem %s7, %s323
        %s325 = smul.u32 16, %s24
        %s326 = smul.u32 16, %s24
        %p327 = scmp.lt.s32.totalorder %s326, 31
        %s328 = scalar_select %p327, %s326, 31
        %s329 = smul.addr %s328, 8
        %s330 = scalar_lea.vmem %s7, %s329
        %s331 = smul.u32 16, %s24
        %v333 = vld [vmem:[%s286] sm:$0xf]
        %v334 = vld [vmem:[%s286 + $0x4] sm:$0xf]
        %v335 = vld [vmem:[%s286 + $0x8] sm:$0xf]
        %v336 = vld [vmem:[%s286 + $0xc] sm:$0xf]
        %v337 = vld [vmem:[%s286 + $0x10] sm:$0xf]
        %v338 = vld [vmem:[%s286 + $0x14] sm:$0xf]
        %v339 = vld [vmem:[%s286 + $0x18] sm:$0xf]
        %v340 = vld [vmem:[%s286 + $0x1c] sm:$0xf]
        %v341 = vld [vmem:[%s286 + $0x20] sm:$0xf]
        %v342 = vld [vmem:[%s286 + $0x24] sm:$0xf]
        %v343 = vld [vmem:[%s286 + $0x28] sm:$0xf]
        %v344 = vld [vmem:[%s286 + $0x2c] sm:$0xf]
        %v345 = vld [vmem:[%s286 + $0x30] sm:$0xf]
        %v346 = vld [vmem:[%s286 + $0x34] sm:$0xf]
        %v347 = vld [vmem:[%s286 + $0x38] sm:$0xf]
        %v348 = vld [vmem:[%s286 + $0x3c] sm:$0xf]
        %v349 = vld [vmem:[#allocation5] sm:$0xf]
        %v350 = vld [vmem:[#allocation5 + $0x4] sm:$0xf]
        %v351 = vld [vmem:[#allocation5 + $0x8] sm:$0xf]
        %v352 = vld [vmem:[#allocation5 + $0xc] sm:$0xf]
        %v353 = vld [vmem:[#allocation5 + $0x10] sm:$0xf]
        %v354 = vld [vmem:[#allocation5 + $0x14] sm:$0xf]
        %v355 = vld [vmem:[#allocation5 + $0x18] sm:$0xf]
        %v356 = vld [vmem:[#allocation5 + $0x1c] sm:$0xf]
        %v357 = vld [vmem:[#allocation5 + $0x20] sm:$0xf]
        %v358 = vld [vmem:[#allocation5 + $0x24] sm:$0xf]
        %v359 = vld [vmem:[#allocation5 + $0x28] sm:$0xf]
        %v360 = vld [vmem:[#allocation5 + $0x2c] sm:$0xf]
        %v361 = vld [vmem:[#allocation5 + $0x30] sm:$0xf]
        %v362 = vld [vmem:[#allocation5 + $0x34] sm:$0xf]
        %v363 = vld [vmem:[#allocation5 + $0x38] sm:$0xf]
        %v364 = vld [vmem:[#allocation5 + $0x3c] sm:$0xf]
        %v365 = vld [vmem:[%s2] sm:$0x1]
        %v367 = vlaneseq
        %v368 = vshrl.u32 %v367, 7
        %v369 = vsub.s32 0, %v368
        %v370 = vrot.slane %v365, %v369
        %v388 = vunpack.c.l.b16 %v333
        %v389 = vunpack.c.l.b16 %v334
        %v390 = vunpack.c.l.b16 %v335
        %v391 = vunpack.c.l.b16 %v336
        %v392 = vunpack.c.l.b16 %v337
        %v393 = vunpack.c.l.b16 %v338
        %v394 = vunpack.c.l.b16 %v339
        %v395 = vunpack.c.l.b16 %v340
        %v396 = vunpack.c.l.b16 %v341
        %v397 = vunpack.c.l.b16 %v342
        %v398 = vunpack.c.l.b16 %v343
        %v399 = vunpack.c.l.b16 %v344
        %v400 = vunpack.c.l.b16 %v345
        %v401 = vunpack.c.l.b16 %v346
        %v402 = vunpack.c.l.b16 %v347
        %v403 = vunpack.c.l.b16 %v348
        %v404 = vpack.c.b16 %v389, %v388
        %v405 = vpack.c.b16 %v391, %v390
        %v406 = vpack.c.b16 %v393, %v392
        %v407 = vpack.c.b16 %v395, %v394
        %v408 = vpack.c.b16 %v397, %v396
        %v409 = vpack.c.b16 %v399, %v398
        %v410 = vpack.c.b16 %v401, %v400
        %v411 = vpack.c.b16 %v403, %v402
        %v436 = vunpack.c.l.b16 %v349
        %v437 = vunpack.c.l.b16 %v350
        %v438 = vunpack.c.l.b16 %v351
        %v439 = vunpack.c.l.b16 %v352
        %v440 = vunpack.c.l.b16 %v353
        %v441 = vunpack.c.l.b16 %v354
        %v442 = vunpack.c.l.b16 %v355
        %v443 = vunpack.c.l.b16 %v356
        %v444 = vunpack.c.l.b16 %v357
        %v445 = vunpack.c.l.b16 %v358
        %v446 = vunpack.c.l.b16 %v359
        %v447 = vunpack.c.l.b16 %v360
        %v448 = vunpack.c.l.b16 %v361
        %v449 = vunpack.c.l.b16 %v362
        %v450 = vunpack.c.l.b16 %v363
        %v451 = vunpack.c.l.b16 %v364
        %v452 = vpack.c.b16 %v437, %v436
        %v453 = vpack.c.b16 %v439, %v438
        %v454 = vpack.c.b16 %v441, %v440
        %v455 = vpack.c.b16 %v443, %v442
        %v456 = vpack.c.b16 %v445, %v444
        %v457 = vpack.c.b16 %v447, %v446
        %v458 = vpack.c.b16 %v449, %v448
        %v459 = vpack.c.b16 %v451, %v450
        %468 = vmatprep.subr.bf16.mxu0 0
        %469 = vmatpush1.bf16.msra.mxu0 %v459
        %470 = vmatprep.subr.bf16.mxu0 0
        %471 = vmatpush1.bf16.msra.mxu0 %v458
        %472 = vmatprep.subr.bf16.mxu0 0
        %473 = vmatpush1.bf16.msra.mxu0 %v457
        %474 = vmatprep.subr.bf16.mxu0 0
        %475 = vmatpush1.bf16.msra.mxu0 %v456
        %476 = vmatprep.subr.bf16.mxu0 0
        %477 = vmatpush1.bf16.msra.mxu0 %v455
        %478 = vmatprep.subr.bf16.mxu0 0
        %479 = vmatpush1.bf16.msra.mxu0 %v454
        %480 = vmatprep.subr.bf16.mxu0 0
        %481 = vmatpush1.bf16.msra.mxu0 %v453
        %482 = vmatprep.subr.bf16.mxu0 0
        %483 = vmatpush1.bf16.msra.mxu0 %v452
        %484 = vmatprep.subr.bf16.mxu0 0
        %485 = vmatpush2.bf16.msra.mxu0 0
        %486 = vmatprep.subr.bf16.mxu0 0
        %487 = vmatpush2.bf16.msra.mxu0 0
        %488 = vmatprep.subr.bf16.mxu0 0
        %489 = vmatpush2.bf16.msra.mxu0 0
        %490 = vmatprep.subr.bf16.mxu0 0
        %491 = vmatpush2.bf16.msra.mxu0 0
        %492 = vmatprep.subr.bf16.mxu0 0
        %493 = vmatpush2.bf16.msra.mxu0 0
        %494 = vmatprep.subr.bf16.mxu0 0
        %495 = vmatpush2.bf16.msra.mxu0 0
        %496 = vmatprep.subr.bf16.mxu0 0
        %497 = vmatpush2.bf16.msra.mxu0 0
        %498 = vmatprep.subr.bf16.mxu0 0
        %499 = vmatpush2.bf16.msra.mxu0 0
        %500 = vmatprep.mubr.bf16.mxu0 0
        %501 = vmatmul.mubr.bf16.gmra.mxu0 %v404
        %v502 = vpop.f32.mrf.mxu0
        %v503 = vadd.f32 %v370, %v502
        %v504 = vpop.f32.mrf.mxu0
        %v505 = vpop.f32.mrf.mxu0
        %v506 = vadd.f32 %v370, %v505
        %v507 = vpop.f32.mrf.mxu0
        %508 = vmatprep.mubr.bf16.mxu0 0
        %509 = vmatmul.mubr.bf16.gmra.mxu0 %v405
        %v510 = vpop.f32.mrf.mxu0
        %v511 = vadd.f32 %v370, %v510
        %v512 = vpop.f32.mrf.mxu0
        %v513 = vpop.f32.mrf.mxu0
        %v514 = vadd.f32 %v370, %v513
        %v515 = vpop.f32.mrf.mxu0
        %516 = vmatprep.mubr.bf16.mxu0 0
        %517 = vmatmul.mubr.bf16.gmra.mxu0 %v406
        %v518 = vpop.f32.mrf.mxu0
        %v519 = vadd.f32 %v370, %v518
        %v520 = vpop.f32.mrf.mxu0
        %v521 = vpop.f32.mrf.mxu0
        %v522 = vadd.f32 %v370, %v521
        %v523 = vpop.f32.mrf.mxu0
        %524 = vmatprep.mubr.bf16.mxu0 0
        %525 = vmatmul.mubr.bf16.gmra.mxu0 %v407
        %v526 = vpop.f32.mrf.mxu0
        %v527 = vadd.f32 %v370, %v526
        %v528 = vpop.f32.mrf.mxu0
        %v529 = vpop.f32.mrf.mxu0
        %v530 = vadd.f32 %v370, %v529
        %v531 = vpop.f32.mrf.mxu0
        %532 = vmatprep.mubr.bf16.mxu0 0
        %533 = vmatmul.mubr.bf16.gmra.mxu0 %v408
        %v534 = vpop.f32.mrf.mxu0
        %v535 = vadd.f32 %v370, %v534
        %v536 = vpop.f32.mrf.mxu0
        %v537 = vpop.f32.mrf.mxu0
        %v538 = vadd.f32 %v370, %v537
        %v539 = vpop.f32.mrf.mxu0
        %540 = vmatprep.mubr.bf16.mxu0 0
        %541 = vmatmul.mubr.bf16.gmra.mxu0 %v409
        %v542 = vpop.f32.mrf.mxu0
        %v543 = vadd.f32 %v370, %v542
        %v544 = vpop.f32.mrf.mxu0
        %v545 = vpop.f32.mrf.mxu0
        %v546 = vadd.f32 %v370, %v545
        %v547 = vpop.f32.mrf.mxu0
        %548 = vmatprep.mubr.bf16.mxu0 0
        %549 = vmatmul.mubr.bf16.gmra.mxu0 %v410
        %v550 = vpop.f32.mrf.mxu0
        %v551 = vadd.f32 %v370, %v550
        %v552 = vpop.f32.mrf.mxu0
        %v553 = vpop.f32.mrf.mxu0
        %v554 = vadd.f32 %v370, %v553
        %v555 = vpop.f32.mrf.mxu0
        %556 = vmatprep.mubr.bf16.mxu0 0
        %557 = vmatmul.mubr.bf16.gmra.mxu0 %v411
        %v558 = vpop.f32.mrf.mxu0
        %v559 = vadd.f32 %v370, %v558
        %v560 = vpop.f32.mrf.mxu0
        %v561 = vpop.f32.mrf.mxu0
        %v562 = vadd.f32 %v370, %v561
        %v563 = vpop.f32.mrf.mxu0
        %564 = vdwg.mxu0
        %v565 = vmax.f32 %v503, 0.0
        %v566 = vmax.f32 %v506, 0.0
        %v567 = vmax.f32 %v511, 0.0
        %v568 = vmax.f32 %v514, 0.0
        %v569 = vmax.f32 %v519, 0.0
        %v570 = vmax.f32 %v522, 0.0
        %v571 = vmax.f32 %v527, 0.0
        %v572 = vmax.f32 %v530, 0.0
        %v573 = vmax.f32 %v535, 0.0
        %v574 = vmax.f32 %v538, 0.0
        %v575 = vmax.f32 %v543, 0.0
        %v576 = vmax.f32 %v546, 0.0
        %v577 = vmax.f32 %v551, 0.0
        %v578 = vmax.f32 %v554, 0.0
        %v579 = vmax.f32 %v559, 0.0
        %v580 = vmax.f32 %v562, 0.0
        %v581 = vpack.c.bf16 %v566, %v565
        %v582 = vpack.c.bf16 %v568, %v567
        %v583 = vpack.c.bf16 %v570, %v569
        %v584 = vpack.c.bf16 %v572, %v571
        %v585 = vpack.c.bf16 %v574, %v573
        %v586 = vpack.c.bf16 %v576, %v575
        %v587 = vpack.c.bf16 %v578, %v577
        %v588 = vpack.c.bf16 %v580, %v579
        %v589 = vld [vmem:[#allocation7] sm:$0xf]
        %v590 = vld [vmem:[#allocation7 + $0x4] sm:$0xf]
        %v591 = vld [vmem:[#allocation7 + $0x8] sm:$0xf]
        %v592 = vld [vmem:[#allocation7 + $0xc] sm:$0xf]
        %v593 = vld [vmem:[#allocation7 + $0x10] sm:$0xf]
        %v594 = vld [vmem:[#allocation7 + $0x14] sm:$0xf]
        %v595 = vld [vmem:[#allocation7 + $0x18] sm:$0xf]
        %v596 = vld [vmem:[#allocation7 + $0x1c] sm:$0xf]
        %v597 = vld [vmem:[#allocation7 + $0x20] sm:$0xf]
        %v598 = vld [vmem:[#allocation7 + $0x24] sm:$0xf]
        %v599 = vld [vmem:[#allocation7 + $0x28] sm:$0xf]
        %v600 = vld [vmem:[#allocation7 + $0x2c] sm:$0xf]
        %v601 = vld [vmem:[#allocation7 + $0x30] sm:$0xf]
        %v602 = vld [vmem:[#allocation7 + $0x34] sm:$0xf]
        %v603 = vld [vmem:[#allocation7 + $0x38] sm:$0xf]
        %v604 = vld [vmem:[#allocation7 + $0x3c] sm:$0xf]
        %v605 = vld [vmem:[%s4] sm:$0x1]
        %v607 = vlaneseq
        %v608 = vshrl.u32 %v607, 7
        %v609 = vsub.s32 0, %v608
        %v610 = vrot.slane %v605, %v609
        %v628 = vunpack.c.l.b16 %v589
        %v629 = vunpack.c.l.b16 %v590
        %v630 = vunpack.c.l.b16 %v591
        %v631 = vunpack.c.l.b16 %v592
        %v632 = vunpack.c.l.b16 %v593
        %v633 = vunpack.c.l.b16 %v594
        %v634 = vunpack.c.l.b16 %v595
        %v635 = vunpack.c.l.b16 %v596
        %v636 = vunpack.c.l.b16 %v597
        %v637 = vunpack.c.l.b16 %v598
        %v638 = vunpack.c.l.b16 %v599
        %v639 = vunpack.c.l.b16 %v600
        %v640 = vunpack.c.l.b16 %v601
        %v641 = vunpack.c.l.b16 %v602
        %v642 = vunpack.c.l.b16 %v603
        %v643 = vunpack.c.l.b16 %v604
        %v644 = vpack.c.b16 %v629, %v628
        %v645 = vpack.c.b16 %v631, %v630
        %v646 = vpack.c.b16 %v633, %v632
        %v647 = vpack.c.b16 %v635, %v634
        %v648 = vpack.c.b16 %v637, %v636
        %v649 = vpack.c.b16 %v639, %v638
        %v650 = vpack.c.b16 %v641, %v640
        %v651 = vpack.c.b16 %v643, %v642
        %660 = vmatprep.subr.bf16.mxu0 0
        %661 = vmatpush1.bf16.msra.mxu0 %v651
        %662 = vmatprep.subr.bf16.mxu0 0
        %663 = vmatpush1.bf16.msra.mxu0 %v650
        %664 = vmatprep.subr.bf16.mxu0 0
        %665 = vmatpush1.bf16.msra.mxu0 %v649
        %666 = vmatprep.subr.bf16.mxu0 0
        %667 = vmatpush1.bf16.msra.mxu0 %v648
        %668 = vmatprep.subr.bf16.mxu0 0
        %669 = vmatpush1.bf16.msra.mxu0 %v647
        %670 = vmatprep.subr.bf16.mxu0 0
        %671 = vmatpush1.bf16.msra.mxu0 %v646
        %672 = vmatprep.subr.bf16.mxu0 0
        %673 = vmatpush1.bf16.msra.mxu0 %v645
        %674 = vmatprep.subr.bf16.mxu0 0
        %675 = vmatpush1.bf16.msra.mxu0 %v644
        %676 = vmatprep.subr.bf16.mxu0 0
        %677 = vmatpush2.bf16.msra.mxu0 0
        %678 = vmatprep.subr.bf16.mxu0 0
        %679 = vmatpush2.bf16.msra.mxu0 0
        %680 = vmatprep.subr.bf16.mxu0 0
        %681 = vmatpush2.bf16.msra.mxu0 0
        %682 = vmatprep.subr.bf16.mxu0 0
        %683 = vmatpush2.bf16.msra.mxu0 0
        %684 = vmatprep.subr.bf16.mxu0 0
        %685 = vmatpush2.bf16.msra.mxu0 0
        %686 = vmatprep.subr.bf16.mxu0 0
        %687 = vmatpush2.bf16.msra.mxu0 0
        %688 = vmatprep.subr.bf16.mxu0 0
        %689 = vmatpush2.bf16.msra.mxu0 0
        %690 = vmatprep.subr.bf16.mxu0 0
        %691 = vmatpush2.bf16.msra.mxu0 0
        %692 = vmatprep.mubr.bf16.mxu0 0
        %693 = vmatmul.mubr.bf16.gmra.mxu0 %v581
        %v694 = vpop.f32.mrf.mxu0
        %v695 = vadd.f32 %v610, %v694
        %v696 = vpop.f32.mrf.mxu0
        %v697 = vpop.f32.mrf.mxu0
        %v698 = vadd.f32 %v610, %v697
        %v699 = vpop.f32.mrf.mxu0
        %700 = vmatprep.mubr.bf16.mxu0 0
        %701 = vmatmul.mubr.bf16.gmra.mxu0 %v582
        %v702 = vpop.f32.mrf.mxu0
        %v703 = vadd.f32 %v610, %v702
        %v704 = vpop.f32.mrf.mxu0
        %v705 = vpop.f32.mrf.mxu0
        %v706 = vadd.f32 %v610, %v705
        %v707 = vpop.f32.mrf.mxu0
        %708 = vmatprep.mubr.bf16.mxu0 0
        %709 = vmatmul.mubr.bf16.gmra.mxu0 %v583
        %v710 = vpop.f32.mrf.mxu0
        %v711 = vadd.f32 %v610, %v710
        %v712 = vpop.f32.mrf.mxu0
        %v713 = vpop.f32.mrf.mxu0
        %v714 = vadd.f32 %v610, %v713
        %v715 = vpop.f32.mrf.mxu0
        %716 = vmatprep.mubr.bf16.mxu0 0
        %717 = vmatmul.mubr.bf16.gmra.mxu0 %v584
        %v718 = vpop.f32.mrf.mxu0
        %v719 = vadd.f32 %v610, %v718
        %v720 = vpop.f32.mrf.mxu0
        %v721 = vpop.f32.mrf.mxu0
        %v722 = vadd.f32 %v610, %v721
        %v723 = vpop.f32.mrf.mxu0
        %724 = vmatprep.mubr.bf16.mxu0 0
        %725 = vmatmul.mubr.bf16.gmra.mxu0 %v585
        %v726 = vpop.f32.mrf.mxu0
        %v727 = vadd.f32 %v610, %v726
        %v728 = vpop.f32.mrf.mxu0
        %v729 = vpop.f32.mrf.mxu0
        %v730 = vadd.f32 %v610, %v729
        %v731 = vpop.f32.mrf.mxu0
        %732 = vmatprep.mubr.bf16.mxu0 0
        %733 = vmatmul.mubr.bf16.gmra.mxu0 %v586
        %v734 = vpop.f32.mrf.mxu0
        %v735 = vadd.f32 %v610, %v734
        %v736 = vpop.f32.mrf.mxu0
        %v737 = vpop.f32.mrf.mxu0
        %v738 = vadd.f32 %v610, %v737
        %v739 = vpop.f32.mrf.mxu0
        %740 = vmatprep.mubr.bf16.mxu0 0
        %741 = vmatmul.mubr.bf16.gmra.mxu0 %v587
        %v742 = vpop.f32.mrf.mxu0
        %v743 = vadd.f32 %v610, %v742
        %v744 = vpop.f32.mrf.mxu0
        %v745 = vpop.f32.mrf.mxu0
        %v746 = vadd.f32 %v610, %v745
        %v747 = vpop.f32.mrf.mxu0
        %748 = vmatprep.mubr.bf16.mxu0 0
        %749 = vmatmul.mubr.bf16.gmra.mxu0 %v588
        %v750 = vpop.f32.mrf.mxu0
        %v751 = vadd.f32 %v610, %v750
        %v752 = vpop.f32.mrf.mxu0
        %v753 = vpop.f32.mrf.mxu0
        %v754 = vadd.f32 %v610, %v753
        %v755 = vpop.f32.mrf.mxu0
        %756 = vdwg.mxu0
        %v757 = vmax.f32 %v695, 0.0
        %v758 = vmax.f32 %v698, 0.0
        %v759 = vmax.f32 %v703, 0.0
        %v760 = vmax.f32 %v706, 0.0
        %v761 = vmax.f32 %v711, 0.0
        %v762 = vmax.f32 %v714, 0.0
        %v763 = vmax.f32 %v719, 0.0
        %v764 = vmax.f32 %v722, 0.0
        %v765 = vmax.f32 %v727, 0.0
        %v766 = vmax.f32 %v730, 0.0
        %v767 = vmax.f32 %v735, 0.0
        %v768 = vmax.f32 %v738, 0.0
        %v769 = vmax.f32 %v743, 0.0
        %v770 = vmax.f32 %v746, 0.0
        %v771 = vmax.f32 %v751, 0.0
        %v772 = vmax.f32 %v754, 0.0
        %v773 = vld [vmem:[%s5] sm:$0x1]
        %v775 = vlaneseq
        %v776 = vshrl.u32 %v775, 7
        %v777 = vsub.s32 0, %v776
        %v778 = vrot.slane %v773, %v777
        %v780 = vmul.f32 %v757, %v778
        %v781 = vmul.f32 %v758, %v778
        %v782 = vmul.f32 %v759, %v778
        %v783 = vmul.f32 %v760, %v778
        %v784 = vmul.f32 %v761, %v778
        %v785 = vmul.f32 %v762, %v778
        %v786 = vmul.f32 %v763, %v778
        %v787 = vmul.f32 %v764, %v778
        %v788 = vmul.f32 %v765, %v778
        %v789 = vmul.f32 %v766, %v778
        %v790 = vmul.f32 %v767, %v778
        %v791 = vmul.f32 %v768, %v778
        %v792 = vmul.f32 %v769, %v778
        %v793 = vmul.f32 %v770, %v778
        %v794 = vmul.f32 %v771, %v778
        %v795 = vmul.f32 %v772, %v778
        %796 = vadd.xlane.f32.xlu0 %v780
        %v797 = vpop.xlane.xlu0 %796
        %798 = vadd.xlane.f32.xlu0 %v781
        %v799 = vpop.xlane.xlu0 %798
        %800 = vadd.xlane.f32.xlu0 %v782
        %v801 = vpop.xlane.xlu0 %800
        %802 = vadd.xlane.f32.xlu0 %v783
        %v803 = vpop.xlane.xlu0 %802
        %804 = vadd.xlane.f32.xlu0 %v784
        %v805 = vpop.xlane.xlu0 %804
        %806 = vadd.xlane.f32.xlu0 %v785
        %v807 = vpop.xlane.xlu0 %806
        %808 = vadd.xlane.f32.xlu0 %v786
        %v809 = vpop.xlane.xlu0 %808
        %810 = vadd.xlane.f32.xlu0 %v787
        %v811 = vpop.xlane.xlu0 %810
        %812 = vadd.xlane.f32.xlu0 %v788
        %v813 = vpop.xlane.xlu0 %812
        %814 = vadd.xlane.f32.xlu0 %v789
        %v815 = vpop.xlane.xlu0 %814
        %816 = vadd.xlane.f32.xlu0 %v790
        %v817 = vpop.xlane.xlu0 %816
        %818 = vadd.xlane.f32.xlu0 %v791
        %v819 = vpop.xlane.xlu0 %818
        %820 = vadd.xlane.f32.xlu0 %v792
        %v821 = vpop.xlane.xlu0 %820
        %822 = vadd.xlane.f32.xlu0 %v793
        %v823 = vpop.xlane.xlu0 %822
        %824 = vadd.xlane.f32.xlu0 %v794
        %v825 = vpop.xlane.xlu0 %824
        %826 = vadd.xlane.f32.xlu0 %v795
        %v827 = vpop.xlane.xlu0 %826
        %v828 = vld [vmem:[#allocation2] sm:$0x1]
        %v830 = vlaneseq
        %v831 = vshrl.u32 %v830, 7
        %v832 = vsub.s32 0, %v831
        %v833 = vrot.slane %v828, %v832
        %v835 = vadd.f32 %v797, %v833
        %v836 = vadd.f32 %v799, %v833
        %v837 = vadd.f32 %v801, %v833
        %v838 = vadd.f32 %v803, %v833
        %v839 = vadd.f32 %v805, %v833
        %v840 = vadd.f32 %v807, %v833
        %v841 = vadd.f32 %v809, %v833
        %v842 = vadd.f32 %v811, %v833
        %v843 = vadd.f32 %v813, %v833
        %v844 = vadd.f32 %v815, %v833
        %v845 = vadd.f32 %v817, %v833
        %v846 = vadd.f32 %v819, %v833
        %v847 = vadd.f32 %v821, %v833
        %v848 = vadd.f32 %v823, %v833
        %v849 = vadd.f32 %v825, %v833
        %v850 = vadd.f32 %v827, %v833
        %v851 = vsub.f32 0.0, %v835
        %v852 = vsub.f32 0.0, %v836
        %v853 = vsub.f32 0.0, %v837
        %v854 = vsub.f32 0.0, %v838
        %v855 = vsub.f32 0.0, %v839
        %v856 = vsub.f32 0.0, %v840
        %v857 = vsub.f32 0.0, %v841
        %v858 = vsub.f32 0.0, %v842
        %v859 = vsub.f32 0.0, %v843
        %v860 = vsub.f32 0.0, %v844
        %v861 = vsub.f32 0.0, %v845
        %v862 = vsub.f32 0.0, %v846
        %v863 = vsub.f32 0.0, %v847
        %v864 = vsub.f32 0.0, %v848
        %v865 = vsub.f32 0.0, %v849
        %v866 = vsub.f32 0.0, %v850
        %v867 = vmul.f32 %v851, 1.442695
        %v868 = vpow.pop %v867
        %v869 = vmul.f32 %v852, 1.442695
        %v870 = vpow.pop %v869
        %v871 = vmul.f32 %v853, 1.442695
        %v872 = vpow.pop %v871
        %v873 = vmul.f32 %v854, 1.442695
        %v874 = vpow.pop %v873
        %v875 = vmul.f32 %v855, 1.442695
        %v876 = vpow.pop %v875
        %v877 = vmul.f32 %v856, 1.442695
        %v878 = vpow.pop %v877
        %v879 = vmul.f32 %v857, 1.442695
        %v880 = vpow.pop %v879
        %v881 = vmul.f32 %v858, 1.442695
        %v882 = vpow.pop %v881
        %v883 = vmul.f32 %v859, 1.442695
        %v884 = vpow.pop %v883
        %v885 = vmul.f32 %v860, 1.442695
        %v886 = vpow.pop %v885
        %v887 = vmul.f32 %v861, 1.442695
        %v888 = vpow.pop %v887
        %v889 = vmul.f32 %v862, 1.442695
        %v890 = vpow.pop %v889
        %v891 = vmul.f32 %v863, 1.442695
        %v892 = vpow.pop %v891
        %v893 = vmul.f32 %v864, 1.442695
        %v894 = vpow.pop %v893
        %v895 = vmul.f32 %v865, 1.442695
        %v896 = vpow.pop %v895
        %v897 = vmul.f32 %v866, 1.442695
        %v898 = vpow.pop %v897
        %v899 = vadd.f32 %v868, 1.0
        %v900 = vadd.f32 %v870, 1.0
        %v901 = vadd.f32 %v872, 1.0
        %v902 = vadd.f32 %v874, 1.0
        %v903 = vadd.f32 %v876, 1.0
        %v904 = vadd.f32 %v878, 1.0
        %v905 = vadd.f32 %v880, 1.0
        %v906 = vadd.f32 %v882, 1.0
        %v907 = vadd.f32 %v884, 1.0
        %v908 = vadd.f32 %v886, 1.0
        %v909 = vadd.f32 %v888, 1.0
        %v910 = vadd.f32 %v890, 1.0
        %v911 = vadd.f32 %v892, 1.0
        %v912 = vadd.f32 %v894, 1.0
        %v913 = vadd.f32 %v896, 1.0
        %v914 = vadd.f32 %v898, 1.0
        %v915 = vrcp.pop %v899
        %v916 = vrcp.pop %v900
        %v917 = vrcp.pop %v901
        %v918 = vrcp.pop %v902
        %v919 = vrcp.pop %v903
        %v920 = vrcp.pop %v904
        %v921 = vrcp.pop %v905
        %v922 = vrcp.pop %v906
        %v923 = vrcp.pop %v907
        %v924 = vrcp.pop %v908
        %v925 = vrcp.pop %v909
        %v926 = vrcp.pop %v910
        %v927 = vrcp.pop %v911
        %v928 = vrcp.pop %v912
        %v929 = vrcp.pop %v913
        %v930 = vrcp.pop %v914
        %vm931 = vcmask 7168
        %932 = vst.msk [vmem:[%s330] sm:$0xff] %vm931, %v915
        %933 = vst.msk [vmem:[%s330 + $0x8] sm:$0xff] %vm931, %v916
        %934 = vst.msk [vmem:[%s330 + $0x10] sm:$0xff] %vm931, %v917
        %935 = vst.msk [vmem:[%s330 + $0x18] sm:$0xff] %vm931, %v918
        %936 = vst.msk [vmem:[%s330 + $0x20] sm:$0xff] %vm931, %v919
        %937 = vst.msk [vmem:[%s330 + $0x28] sm:$0xff] %vm931, %v920
        %938 = vst.msk [vmem:[%s330 + $0x30] sm:$0xff] %vm931, %v921
        %939 = vst.msk [vmem:[%s330 + $0x38] sm:$0xff] %vm931, %v922
        %940 = vst.msk [vmem:[%s330 + $0x40] sm:$0xff] %vm931, %v923
        %941 = vst.msk [vmem:[%s330 + $0x48] sm:$0xff] %vm931, %v924
        %942 = vst.msk [vmem:[%s330 + $0x50] sm:$0xff] %vm931, %v925
        %943 = vst.msk [vmem:[%s330 + $0x58] sm:$0xff] %vm931, %v926
        %944 = vst.msk [vmem:[%s330 + $0x60] sm:$0xff] %vm931, %v927
        %945 = vst.msk [vmem:[%s330 + $0x68] sm:$0xff] %vm931, %v928
        %946 = vst.msk [vmem:[%s330 + $0x70] sm:$0xff] %vm931, %v929
        %947 = vst.msk [vmem:[%s330 + $0x78] sm:$0xff] %vm931, %v930
        %s948 = smul.u32 16, %s24
        %p949 = scmp.lt.s32.totalorder %s948, 31
        %s950 = scalar_select %p949, %s948, 31
        %s951 = smul.addr %s950, 8
        %s952 = scalar_lea.vmem %s7, %s951
        // Predicated region
        $region61: #{tpu_custom_call.1} parent=47 // pred_check
          %p953 = pneg %p194
        $region62: #{tpu_custom_call.1} parent=47 // pred_check_branch
          %955 = sbr.rel (%p953) target = $region64
        $region63: #{tpu_custom_call.1} parent=47 // pred_region
          %s956 = smul.u32 16, %s24
        $region64: #{tpu_custom_call.1} parent=47 // pred_fallthru
          _
      $region48: #{tpu_custom_call.1} parent=5 // pred_fallthru
        _
      %p957 = scmp.le.s32.totalorder 2, %s19
      // Predicated region
      $region65: #{tpu_custom_call.1} parent=5 // pred_check
        %p958 = pneg %p957
      $region66: #{tpu_custom_call.1} parent=5 // pred_check_branch
        %960 = sbr.rel (%p958) target = $region68
      $region67: #{tpu_custom_call.1} parent=5 // pred_region
        %s961 = ssub.s32 %s19, 2
        // Predicated region
        $region69: #{tpu_custom_call.1} parent=67 // pred_check
          %p962 = pneg %p200
        $region70: #{tpu_custom_call.1} parent=67 // pred_check_branch
          %964 = sbr.rel (%p962) target = $region72
        $region71: #{tpu_custom_call.1} parent=67 // pred_region
          %s965 = smul.u32 16, %s25
          %p966 = scmp.lt.s32.totalorder %s965, 31
          %s967 = scalar_select %p966, %s965, 31
          %s968 = smul.addr %s967, 8
          %s969 = scalar_lea.vmem %s7, %s968
        $region72: #{tpu_custom_call.1} parent=67 // pred_fallthru
          _
      $region68: #{tpu_custom_call.1} parent=5 // pred_fallthru
        _
    $region6: #{tpu_custom_call.1} parent=1 // loop_footer
      %s23 = sadd.s32 1, %s19
    $region7: #{tpu_custom_call.1} parent=1 // loop_footer_branch
      %18 = sbr.rel target = $region3
    $region8: #{tpu_custom_call.1} parent=1 // loop_exit
      _
    %970 = vsyncpa [#allocation4], 1
    %s971 = scalar_lea.sflag [#allocation4], 1
    %972 = vsyncpa %s971, 1
    %973 = vsyncpa [#allocation6], 1

</llo_original>
